<compile_context>
chip_gen: v5e
topology: v5e:2x2
jax: 0.10.0
libtpu: 0.0.40
codegen_flags: <defaults>
</compile_context>

<pallas_src>
import functools

import jax
import jax.numpy as jnp
from jax.experimental import pallas as pl
from jax.experimental.pallas import tpu as pltpu

EPS = 1e-5  # PyTorch default eps for InstanceNorm2d / BatchNorm2d


def _ibn_kernel(x_ref, g_ref, b_ref, o_ref, *, c1, tc):
    """Normalize one channel tile.  Block = (N, TC, HW).

    Channels with global index < c1 get InstanceNorm (per-(n,c) stats over HW);
    the rest get BatchNorm (per-channel stats over (N, HW), biased variance).
    Both stats come from one sum / sum-of-squares pass and the affine transform
    is folded into a per-channel scale/bias, so the per-element work is a
    single multiply-add.
    """
    x = x_ref[...].astype(jnp.float32)                       # (N, TC, HW)
    n, _, hw = x.shape
    inv_hw = 1.0 / float(hw)
    inv_nhw = 1.0 / float(n * hw)

    # Single pass: sum and sum-of-squares along the lane (spatial) axis.
    s_nc = jnp.sum(x, axis=-1, keepdims=True)                # (N, TC, 1)
    ss_nc = jnp.sum(x * x, axis=-1, keepdims=True)           # (N, TC, 1)

    # InstanceNorm stats: per (n, c).
    mean_nc = s_nc * inv_hw
    var_nc = jnp.maximum(ss_nc * inv_hw - mean_nc * mean_nc, 0.0)

    # BatchNorm stats: per channel over (N, HW) -- a cheap further reduction of
    # the per-row partial sums over the leading batch dim (count = N*HW, biased).
    s_c = jnp.sum(s_nc, axis=0, keepdims=True)               # (1, TC, 1)
    ss_c = jnp.sum(ss_nc, axis=0, keepdims=True)              # (1, TC, 1)
    mean_c = s_c * inv_nhw
    var_c = jnp.maximum(ss_c * inv_nhw - mean_c * mean_c, 0.0)

    g = g_ref[...].astype(jnp.float32)[None, :, :]            # (1, TC, 1)
    b = b_ref[...].astype(jnp.float32)[None, :, :]            # (1, TC, 1)

    # Fused affine: y = x * scale + bias.
    scale_in = g * jax.lax.rsqrt(var_nc + EPS)                # (N, TC, 1)
    bias_in = b - mean_nc * scale_in
    scale_bn = g * jax.lax.rsqrt(var_c + EPS)                 # (1, TC, 1)
    bias_bn = b - mean_c * scale_bn

    # Per-channel select between the IN half and the BN half.  This also makes
    # tiles that straddle the split boundary legal, so any channel tile works.
    ch = pl.program_id(0) * tc + jax.lax.broadcasted_iota(jnp.int32, (1, tc, 1), 1)
    is_in = ch < c1
    scale = jnp.where(is_in, scale_in, scale_bn)              # (N, TC, 1)
    bias = jnp.where(is_in, bias_in, bias_bn)                 # (N, TC, 1)

    o_ref[...] = (x * scale + bias).astype(o_ref.dtype)


def _pick_channel_tile(C, n, hw, itemsize,
                       tile_budget_bytes=3 * 1024 * 1024,
                       min_grid=8):
    """Pick a channel tile: multiple of 8 dividing C, sized against a VMEM
    budget, while keeping enough grid steps for pipelining / megacore."""
    divisors = [d for d in range(8, C + 1, 8) if C % d == 0]
    if not divisors:
        # Tiny / odd channel counts: full-extent channel blocks are exempt from
        # the (8,128) tiling rule.
        # TODO(synk): huge activations with C not divisible by 8 would need a
        # two-pass (accumulator) BN reduction instead of full-C blocks.
        return C
    per_channel = n * hw * itemsize
    fitting = [d for d in divisors if d * per_channel <= tile_budget_bytes]
    if not fitting:
        fitting = [divisors[0]]       # even the smallest 8-channel tile is big
    pipelined = [d for d in fitting if C // d >= min_grid]
    return max(pipelined) if pipelined else min(fitting)


def ibn_forward(x_nchw, gamma_in, beta_in, gamma_bn, beta_bn):
    """IBN forward (training-mode). x_nchw: (N, C, H, W) -> (N, C, H, W)."""
    N, C, H, W = x_nchw.shape
    c1 = C // 2                       # int(planes / 2)
    hw = H * W

    # Free reshapes only; no activation split/concat in HBM.
    x = x_nchw.reshape(N, C, hw)
    gamma = jnp.concatenate([gamma_in, gamma_bn]).reshape(C, 1)   # tiny (C,)
    beta = jnp.concatenate([beta_in, beta_bn]).reshape(C, 1)

    tc = _pick_channel_tile(C, N, hw, x.dtype.itemsize)
    grid = (C // tc,)

    tile_bytes = N * tc * hw * x.dtype.itemsize
    vmem_limit = int(min(96 * 1024 * 1024,
                         max(32 * 1024 * 1024, 10 * tile_bytes)))

    out = pl.pallas_call(
        functools.partial(_ibn_kernel, c1=c1, tc=tc),
        out_shape=jax.ShapeDtypeStruct((N, C, hw), x.dtype),
        grid=grid,
        in_specs=[
            pl.BlockSpec((N, tc, hw), lambda i: (0, i, 0)),   # activations
            pl.BlockSpec((tc, 1), lambda i: (i, 0)),          # gamma tile
            pl.BlockSpec((tc, 1), lambda i: (i, 0)),          # beta tile
        ],
        out_specs=pl.BlockSpec((N, tc, hw), lambda i: (0, i, 0)),
        compiler_params=pltpu.CompilerParams(
            dimension_semantics=("parallel",),
            vmem_limit_bytes=vmem_limit,
        ),
    )(x, gamma, beta)

    return out.reshape(N, C, H, W)


def ibn_reference(x, gamma_in, beta_in, gamma_bn, beta_bn):
    """Pure-JAX reference matching PyTorch IN(affine)/BN(training) forward."""
    N, C, H, W = x.shape
    half = C // 2
    x1, x2 = x[:, :half], x[:, half:]
    # InstanceNorm2d
    m1 = jnp.mean(x1, axis=(2, 3), keepdims=True)
    v1 = jnp.var(x1, axis=(2, 3), keepdims=True)
    o1 = (x1 - m1) / jnp.sqrt(v1 + EPS)
    o1 = o1 * gamma_in[None, :, None, None] + beta_in[None, :, None, None]
    # BatchNorm2d (batch stats, biased var)
    m2 = jnp.mean(x2, axis=(0, 2, 3), keepdims=True)
    v2 = jnp.var(x2, axis=(0, 2, 3), keepdims=True)
    o2 = (x2 - m2) / jnp.sqrt(v2 + EPS)
    o2 = o2 * gamma_bn[None, :, None, None] + beta_bn[None, :, None, None]
    return jnp.concatenate([o1, o2], axis=1)


def _run_case(key, N, C, H, W):
    k1, k2, k3, k4, k5 = jax.random.split(key, 5)
    half = C // 2
    x = jax.random.normal(k1, (N, C, H, W), dtype=jnp.float32)
    gamma_in = 1.0 + 0.1 * jax.random.normal(k2, (half,), dtype=jnp.float32)
    beta_in = 0.1 * jax.random.normal(k3, (half,), dtype=jnp.float32)
    gamma_bn = 1.0 + 0.1 * jax.random.normal(k4, (C - half,), dtype=jnp.float32)
    beta_bn = 0.1 * jax.random.normal(k5, (C - half,), dtype=jnp.float32)

    out = jax.block_until_ready(
        ibn_forward(x, gamma_in, beta_in, gamma_bn, beta_bn))
    ref = ibn_reference(x, gamma_in, beta_in, gamma_bn, beta_bn)
    assert out.shape == (N, C, H, W)
    assert jnp.allclose(out, ref, atol=1e-4, rtol=1e-4), (
        f"mismatch vs reference at shape {(N, C, H, W)}")


if __name__ == "__main__":
    key = jax.random.PRNGKey(0)
    k_a, k_b = jax.random.split(key)
    # Realistic IBN channel count -> tiled, pipelined grid (TC=8, grid=(8,)).
    _run_case(k_a, 2, 64, 16, 16)
    # Tiny channel count (C=4) -> full-channel-block fallback still correct.
    _run_case(k_b, 2, 4, 16, 16)
    print("KERNEL_OK")
</pallas_src>

<mosaic_0001>
module attributes {stable_mosaic.version = 11 : i64} {
  func.func @_ibn_kernel(%arg0: i32, %arg1: memref<2x8x256xf32, #tpu.memory_space<vmem>>, %arg2: memref<8x1xf32, #tpu.memory_space<vmem>>, %arg3: memref<8x1xf32, #tpu.memory_space<vmem>>, %arg4: memref<2x8x256xf32, #tpu.memory_space<vmem>>) attributes {dimension_semantics = [#tpu.dimension_semantics<parallel>], iteration_bounds = array<i64: 8>, scalar_prefetch = 0 : i64, scratch_operands = 0 : i64, tpu.core_type = #tpu.core_type<tc>, window_params = [{transform_indices = @transform_0, window_bounds = array<i64: 2, 8, 256>}, {transform_indices = @transform_1, window_bounds = array<i64: 8, 1>}, {transform_indices = @transform_2, window_bounds = array<i64: 8, 1>}, {transform_indices = @transform_3, window_bounds = array<i64: 2, 8, 256>}]} {
    %c0 = arith.constant 0 : index
    %c0_0 = arith.constant 0 : index
    %c0_1 = arith.constant 0 : index
    %0 = vector.load %arg1[%c0, %c0_0, %c0_1] : memref<2x8x256xf32, #tpu.memory_space<vmem>>, vector<2x8x256xf32>
    %cst = arith.constant dense<0.000000e+00> : vector<2x8xf32>
    %1 = vector.multi_reduction <add>, %0, %cst [2] : vector<2x8x256xf32> to vector<2x8xf32>
    %2 = vector.shape_cast %1 : vector<2x8xf32> to vector<2x8x1xf32>
    %3 = arith.mulf %0, %0 : vector<2x8x256xf32>
    %cst_2 = arith.constant dense<0.000000e+00> : vector<2x8xf32>
    %4 = vector.multi_reduction <add>, %3, %cst_2 [2] : vector<2x8x256xf32> to vector<2x8xf32>
    %5 = vector.shape_cast %4 : vector<2x8xf32> to vector<2x8x1xf32>
    %cst_3 = arith.constant 3.906250e-03 : f32
    %6 = vector.broadcast %cst_3 : f32 to vector<2x8x1xf32>
    %7 = arith.mulf %2, %6 : vector<2x8x1xf32>
    %cst_4 = arith.constant 3.906250e-03 : f32
    %8 = vector.broadcast %cst_4 : f32 to vector<2x8x1xf32>
    %9 = arith.mulf %5, %8 : vector<2x8x1xf32>
    %10 = arith.mulf %7, %7 : vector<2x8x1xf32>
    %11 = arith.subf %9, %10 : vector<2x8x1xf32>
    %cst_5 = arith.constant 0.000000e+00 : f32
    %12 = vector.broadcast %cst_5 : f32 to vector<2x8x1xf32>
    %13 = arith.maximumf %11, %12 : vector<2x8x1xf32>
    %cst_6 = arith.constant dense<0.000000e+00> : vector<8x1xf32>
    %14 = vector.multi_reduction <add>, %2, %cst_6 [0] : vector<2x8x1xf32> to vector<8x1xf32>
    %15 = vector.shape_cast %14 : vector<8x1xf32> to vector<1x8x1xf32>
    %cst_7 = arith.constant dense<0.000000e+00> : vector<8x1xf32>
    %16 = vector.multi_reduction <add>, %5, %cst_7 [0] : vector<2x8x1xf32> to vector<8x1xf32>
    %17 = vector.shape_cast %16 : vector<8x1xf32> to vector<1x8x1xf32>
    %cst_8 = arith.constant 0.001953125 : f32
    %18 = vector.broadcast %cst_8 : f32 to vector<1x8x1xf32>
    %19 = arith.mulf %15, %18 : vector<1x8x1xf32>
    %cst_9 = arith.constant 0.001953125 : f32
    %20 = vector.broadcast %cst_9 : f32 to vector<1x8x1xf32>
    %21 = arith.mulf %17, %20 : vector<1x8x1xf32>
    %22 = arith.mulf %19, %19 : vector<1x8x1xf32>
    %23 = arith.subf %21, %22 : vector<1x8x1xf32>
    %cst_10 = arith.constant 0.000000e+00 : f32
    %24 = vector.broadcast %cst_10 : f32 to vector<1x8x1xf32>
    %25 = arith.maximumf %23, %24 : vector<1x8x1xf32>
    %c0_11 = arith.constant 0 : index
    %c0_12 = arith.constant 0 : index
    %26 = vector.load %arg2[%c0_11, %c0_12] : memref<8x1xf32, #tpu.memory_space<vmem>>, vector<8x1xf32>
    %27 = vector.shape_cast %26 : vector<8x1xf32> to vector<1x8x1xf32>
    %c0_13 = arith.constant 0 : index
    %c0_14 = arith.constant 0 : index
    %28 = vector.load %arg3[%c0_13, %c0_14] : memref<8x1xf32, #tpu.memory_space<vmem>>, vector<8x1xf32>
    %29 = vector.shape_cast %28 : vector<8x1xf32> to vector<1x8x1xf32>
    %cst_15 = arith.constant 9.99999974E-6 : f32
    %30 = vector.broadcast %cst_15 : f32 to vector<2x8x1xf32>
    %31 = arith.addf %13, %30 : vector<2x8x1xf32>
    %32 = math.rsqrt %31 : vector<2x8x1xf32>
    %33 = vector.broadcast %27 : vector<1x8x1xf32> to vector<2x8x1xf32>
    %34 = arith.mulf %33, %32 : vector<2x8x1xf32>
    %35 = arith.mulf %7, %34 : vector<2x8x1xf32>
    %36 = vector.broadcast %29 : vector<1x8x1xf32> to vector<2x8x1xf32>
    %37 = arith.subf %36, %35 : vector<2x8x1xf32>
    %cst_16 = arith.constant 9.99999974E-6 : f32
    %38 = vector.broadcast %cst_16 : f32 to vector<1x8x1xf32>
    %39 = arith.addf %25, %38 : vector<1x8x1xf32>
    %40 = math.rsqrt %39 : vector<1x8x1xf32>
    %41 = arith.mulf %27, %40 : vector<1x8x1xf32>
    %42 = arith.mulf %19, %41 : vector<1x8x1xf32>
    %43 = arith.subf %29, %42 : vector<1x8x1xf32>
    %c8_i32 = arith.constant 8 : i32
    %44 = arith.muli %arg0, %c8_i32 : i32
    %45 = tpu.iota {dimensions = array<i32: 1>} : vector<1x8x1xi32>
    %46 = vector.broadcast %44 : i32 to vector<1x8x1xi32>
    %47 = arith.addi %46, %45 : vector<1x8x1xi32>
    %c32_i32 = arith.constant 32 : i32
    %48 = vector.broadcast %c32_i32 : i32 to vector<1x8x1xi32>
    %49 = arith.cmpi slt, %47, %48 : vector<1x8x1xi32>
    %50 = vector.shape_cast %49 : vector<1x8x1xi1> to vector<1x8x1xi1>
    %51 = vector.broadcast %50 : vector<1x8x1xi1> to vector<2x8x1xi1>
    %52 = vector.shape_cast %41 : vector<1x8x1xf32> to vector<1x8x1xf32>
    %53 = vector.broadcast %52 : vector<1x8x1xf32> to vector<2x8x1xf32>
    %54 = arith.select %51, %34, %53 : vector<2x8x1xi1>, vector<2x8x1xf32>
    %55 = vector.shape_cast %49 : vector<1x8x1xi1> to vector<1x8x1xi1>
    %56 = vector.broadcast %55 : vector<1x8x1xi1> to vector<2x8x1xi1>
    %57 = vector.shape_cast %43 : vector<1x8x1xf32> to vector<1x8x1xf32>
    %58 = vector.broadcast %57 : vector<1x8x1xf32> to vector<2x8x1xf32>
    %59 = arith.select %56, %37, %58 : vector<2x8x1xi1>, vector<2x8x1xf32>
    %60 = vector.broadcast %54 : vector<2x8x1xf32> to vector<2x8x256xf32>
    %61 = arith.mulf %0, %60 : vector<2x8x256xf32>
    %62 = vector.broadcast %59 : vector<2x8x1xf32> to vector<2x8x256xf32>
    %63 = arith.addf %61, %62 : vector<2x8x256xf32>
    %c0_17 = arith.constant 0 : index
    %c0_18 = arith.constant 0 : index
    %c0_19 = arith.constant 0 : index
    %64 = vector.load %arg4[%c0_17, %c0_18, %c0_19] : memref<2x8x256xf32, #tpu.memory_space<vmem>>, vector<2x8x256xf32>
    tpu.vector_store %arg4[%c0_17, %c0_18, %c0_19], %63 {strides = array<i32>} : memref<2x8x256xf32, #tpu.memory_space<vmem>>, vector<2x8x256xf32>,
    return
  }
  func.func @transform_0(%arg0: i32) -> (i32, i32, i32) {
    %c0_i32 = arith.constant 0 : i32
    %c0_i32_0 = arith.constant 0 : i32
    %c0_i32_1 = arith.constant 0 : i32
    return %c0_i32, %arg0, %c0_i32_0 : i32, i32, i32
  }
  func.func @transform_1(%arg0: i32) -> (i32, i32) {
    %c0_i32 = arith.constant 0 : i32
    %c0_i32_0 = arith.constant 0 : i32
    return %arg0, %c0_i32 : i32, i32
  }
  func.func @transform_2(%arg0: i32) -> (i32, i32) {
    %c0_i32 = arith.constant 0 : i32
    %c0_i32_0 = arith.constant 0 : i32
    return %arg0, %c0_i32 : i32, i32
  }
  func.func @transform_3(%arg0: i32) -> (i32, i32, i32) {
    %c0_i32 = arith.constant 0 : i32
    %c0_i32_0 = arith.constant 0 : i32
    %c0_i32_1 = arith.constant 0 : i32
    return %c0_i32, %arg0, %c0_i32_0 : i32, i32, i32
  }
}

</mosaic_0001>

<llo_original>
// kernel: tpu_custom_call.1
$region0: #{tpu_custom_call.1}
  #allocation0 [shape = 'u32[]', space=smem, size = 0x4, offset = 0x4, fixed_abs, tag = 'smem constant byte address 0x4 - core index']
  #allocation1 [shape = 'u32[72,128]{1,0:T(1,128)}', space=vmem, size = 0x9000, scoped, tag = 'internal scratch']
  %s0 = inlined_call_operand.hbm [shape: f32[2,64,256], index: 0, kind: input, shape index: {}]
  %s1 = inlined_call_operand.vmem [shape: f32[64,1], index: 1, kind: input, shape index: {}]
  %s2 = inlined_call_operand.vmem [shape: f32[64,1], index: 2, kind: input, shape index: {}]
  %s3 = inlined_call_operand.hbm [shape: f32[2,64,256], index: 3, kind: output, shape index: {}]
  %s4 = sld [smem:[#allocation0]]
  $region49: #{tpu_custom_call.1} parent=0
    _
  %s6 = ssub.s32 1, %s4
  %s7 = scalar_select 0, %s6, %s4
  $region1: #{tpu_custom_call.1} parent=0
    #allocation2 [shape = 'u8[32768]{0}', space=vmem, size = 0x8000, scoped, tag = 'input window, operand 0']
    #allocation3 [shape = 's32[2]{0}', space=sflag, size = 0x8, scoped, tag = 'scoped memory for tpu_custom_call.1']
    #allocation4 [shape = 's32[2]{0}', space=sflag, size = 0x8, scoped, tag = 'scoped memory for tpu_custom_call.1']
    #allocation5 [shape = 'u8[32768]{0}', space=vmem, size = 0x8000, scoped, tag = 'output window, operand 0']
    %8 = vsyncpa [#allocation3], 0
    %s9 = scalar_lea.sflag [#allocation3], 1
    %10 = vsyncpa %s9, 0
    %11 = vsyncpa [#allocation4], 0
    %s12 = scalar_lea.sflag [#allocation4], 1
    %13 = vsyncpa %s12, 0
    loop: start=0, step=1, limit=10
    $region2: #{tpu_custom_call.1} parent=1 // loop_pre_header
      _
    $region3: #{tpu_custom_call.1} parent=1 // loop_header
      %s15 = sphi 0, %s19
      %p16 = scmp.ge.s32.totalorder %s15, 10
      %s25 = sphi 0, %s27
      %s28 = sphi 0, %s25
      %s29 = sphi 0, %s28
      %s45 = sphi 0, %s29
      %s51 = sphi 0, %s53
      %s54 = sphi 0, %s51
      %s55 = sphi 0, %s54
      %s71 = sphi 0, %s55
      %s77 = sphi 0, %s79
      %s80 = sphi 0, %s77
      %s81 = sphi 0, %s80
      %s97 = sphi 0, %s81
      %s103 = sphi 0, %s105
      %s106 = sphi 0, %s103
      %s107 = sphi 0, %s106
      %s123 = sphi 0, %s107
    $region4: #{tpu_custom_call.1} parent=1 // loop_header_branch
      %18 = sbr.rel (%p16) target = $region8
    $region5: #{tpu_custom_call.1} parent=1 // loop_body
      %s20 = ssub.s32 %s15, 1
      %s21 = ssub.s32 %s15, 2
      %s22 = sadd.s32 %s15, 1
      %s23 = ssub.s32 %s15, %s22
      %p24 = scmp.eq.s32.totalorder %s23, 0
      %s26 = sadd.s32 %s25, 1
      %s27 = scalar_select %p24, %s25, %s26
      %p30 = pneg %p24
      %p31 = scmp.eq.s32.totalorder %s15, 7
      %p32 = por %p30, %p31
      %p33 = scmp.ne.s32.totalorder %s25, %s28
      %p34 = scmp.eq.s32.totalorder %s15, 0
      %p35 = por %p33, %p34
      %p36 = scmp.ne.s32.totalorder %s25, %s28
      %p37 = scmp.eq.s32.totalorder %s20, 7
      %p38 = por %p36, %p37
      %p39 = scmp.ne.s32.totalorder %s28, %s29
      %p40 = scmp.eq.s32.totalorder %s20, 0
      %p41 = por %p39, %p40
      %p42 = scmp.ne.s32.totalorder %s28, %s29
      %p43 = scmp.eq.s32.totalorder %s21, 7
      %p44 = por %p42, %p43
      %p46 = scmp.ne.s32.totalorder %s29, %s45
      %p47 = scmp.eq.s32.totalorder %s21, 0
      %p48 = por %p46, %p47
      %s49 = ssub.s32 %s15, %s22
      %p50 = scmp.eq.s32.totalorder %s49, 0
      %s52 = sadd.s32 %s51, 1
      %s53 = scalar_select %p50, %s51, %s52
      %p56 = pneg %p50
      %p57 = scmp.eq.s32.totalorder %s15, 7
      %p58 = por %p56, %p57
      %p59 = scmp.ne.s32.totalorder %s51, %s54
      %p60 = scmp.eq.s32.totalorder %s15, 0
      %p61 = por %p59, %p60
      %p62 = scmp.ne.s32.totalorder %s51, %s54
      %p63 = scmp.eq.s32.totalorder %s20, 7
      %p64 = por %p62, %p63
      %p65 = scmp.ne.s32.totalorder %s54, %s55
      %p66 = scmp.eq.s32.totalorder %s20, 0
      %p67 = por %p65, %p66
      %p68 = scmp.ne.s32.totalorder %s54, %s55
      %p69 = scmp.eq.s32.totalorder %s21, 7
      %p70 = por %p68, %p69
      %p72 = scmp.ne.s32.totalorder %s55, %s71
      %p73 = scmp.eq.s32.totalorder %s21, 0
      %p74 = por %p72, %p73
      %s75 = ssub.s32 %s15, %s22
      %p76 = scmp.eq.s32.totalorder %s75, 0
      %s78 = sadd.s32 %s77, 1
      %s79 = scalar_select %p76, %s77, %s78
      %p82 = pneg %p76
      %p83 = scmp.eq.s32.totalorder %s15, 7
      %p84 = por %p82, %p83
      %p85 = scmp.ne.s32.totalorder %s77, %s80
      %p86 = scmp.eq.s32.totalorder %s15, 0
      %p87 = por %p85, %p86
      %p88 = scmp.ne.s32.totalorder %s77, %s80
      %p89 = scmp.eq.s32.totalorder %s20, 7
      %p90 = por %p88, %p89
      %p91 = scmp.ne.s32.totalorder %s80, %s81
      %p92 = scmp.eq.s32.totalorder %s20, 0
      %p93 = por %p91, %p92
      %p94 = scmp.ne.s32.totalorder %s80, %s81
      %p95 = scmp.eq.s32.totalorder %s21, 7
      %p96 = por %p94, %p95
      %p98 = scmp.ne.s32.totalorder %s81, %s97
      %p99 = scmp.eq.s32.totalorder %s21, 0
      %p100 = por %p98, %p99
      %s101 = ssub.s32 %s15, %s22
      %p102 = scmp.eq.s32.totalorder %s101, 0
      %s104 = sadd.s32 %s103, 1
      %s105 = scalar_select %p102, %s103, %s104
      %p108 = pneg %p102
      %p109 = scmp.eq.s32.totalorder %s15, 7
      %p110 = por %p108, %p109
      %p111 = scmp.ne.s32.totalorder %s103, %s106
      %p112 = scmp.eq.s32.totalorder %s15, 0
      %p113 = por %p111, %p112
      %p114 = scmp.ne.s32.totalorder %s103, %s106
      %p115 = scmp.eq.s32.totalorder %s20, 7
      %p116 = por %p114, %p115
      %p117 = scmp.ne.s32.totalorder %s106, %s107
      %p118 = scmp.eq.s32.totalorder %s20, 0
      %p119 = por %p117, %p118
      %p120 = scmp.ne.s32.totalorder %s106, %s107
      %p121 = scmp.eq.s32.totalorder %s21, 7
      %p122 = por %p120, %p121
      %p124 = scmp.ne.s32.totalorder %s107, %s123
      %p125 = scmp.eq.s32.totalorder %s21, 0
      %p126 = por %p124, %p125
      %p127 = scmp.le.s32.totalorder 1, %s15
      %p128 = scmp.lt.s32.totalorder %s15, 9
      %p129 = pnand %p127, %p128
      %p130 = pneg %p129
      // Predicated region
      $region9: #{tpu_custom_call.1} parent=5 // pred_check
        _
      $region10: #{tpu_custom_call.1} parent=5 // pred_check_branch
        %132 = sbr.rel (%p129) target = $region12
      $region11: #{tpu_custom_call.1} parent=5 // pred_region
        %s133 = ssub.s32 %s15, 1
      $region12: #{tpu_custom_call.1} parent=5 // pred_fallthru
        _
      %p134 = scmp.lt.s32.totalorder %s15, 8
      // Predicated region
      $region13: #{tpu_custom_call.1} parent=5 // pred_check
        %p135 = pneg %p134
      $region14: #{tpu_custom_call.1} parent=5 // pred_check_branch
        %137 = sbr.rel (%p135) target = $region16
      $region15: #{tpu_custom_call.1} parent=5 // pred_region
        // Predicated region
        $region17: #{tpu_custom_call.1} parent=15 // pred_check
          %p138 = pneg %p35
        $region18: #{tpu_custom_call.1} parent=15 // pred_check_branch
          %140 = sbr.rel (%p138) target = $region20
        $region19: #{tpu_custom_call.1} parent=15 // pred_region
          %s141 = sand.u32 %s25, 1
          %s142 = scalar_lea.sflag [#allocation3], %s141
          %s143 = sand.u32 %s25, 1
          %s144 = smul.addr %s143, 32
          %s145 = scalar_lea.vmem [#allocation2], %s144
          %147 = vsyncadd %s142, 0
          %s148 = smul.addr %s15, 2
          %s149 = smul.addr %s148, 8
          %s150 = scalar_lea.hbm %s0, %s149
          %s151 = sshll.u32 %s150, 4
          %s152 = int_to_ptr.hbm [resolvable:$true] %s151
          %s153 = sshll.u32 %s145, 4
          %s154 = int_to_ptr.vmem [resolvable:$true] %s153
          %159 = dma.hbm_to_vmem [thread:$0]  %s152, 512, %s154, %s142, 2048, 256, 16
        $region20: #{tpu_custom_call.1} parent=15 // pred_fallthru
          _
        // Predicated region
        $region21: #{tpu_custom_call.1} parent=15 // pred_check
          %p160 = pneg %p61
        $region22: #{tpu_custom_call.1} parent=15 // pred_check_branch
          %162 = sbr.rel (%p160) target = $region24
        $region23: #{tpu_custom_call.1} parent=15 // pred_region
          %p163 = scmp.lt.s32.totalorder %s15, 7
          %s164 = scalar_select %p163, %s15, 7
          %s165 = smul.addr %s164, 8
          %s166 = scalar_lea.vmem %s1, %s165
        $region24: #{tpu_custom_call.1} parent=15 // pred_fallthru
          _
        // Predicated region
        $region25: #{tpu_custom_call.1} parent=15 // pred_check
          %p167 = pneg %p87
        $region26: #{tpu_custom_call.1} parent=15 // pred_check_branch
          %169 = sbr.rel (%p167) target = $region28
        $region27: #{tpu_custom_call.1} parent=15 // pred_region
          %p170 = scmp.lt.s32.totalorder %s15, 7
          %s171 = scalar_select %p170, %s15, 7
          %s172 = smul.addr %s171, 8
          %s173 = scalar_lea.vmem %s2, %s172
        $region28: #{tpu_custom_call.1} parent=15 // pred_fallthru
          _
      $region16: #{tpu_custom_call.1} parent=5 // pred_fallthru
        _
      %p174 = scmp.le.s32.totalorder 1, %s15
      %p175 = scmp.lt.s32.totalorder %s15, 9
      %p176 = pnand %p174, %p175
      %p177 = pneg %p176
      // Predicated region
      $region29: #{tpu_custom_call.1} parent=5 // pred_check
        _
      $region30: #{tpu_custom_call.1} parent=5 // pred_check_branch
        %179 = sbr.rel (%p176) target = $region32
      $region31: #{tpu_custom_call.1} parent=5 // pred_region
        %s180 = ssub.s32 %s15, 1
        %s181 = sand.u32 %s28, 1
        %s182 = scalar_lea.sflag [#allocation3], %s181
        %s183 = sand.u32 %s28, 1
        %s184 = smul.addr %s183, 32
        %s185 = scalar_lea.vmem [#allocation2], %s184
        // Predicated region
        $region33: #{tpu_custom_call.1} parent=31 // pred_check
          %p186 = pneg %p41
        $region34: #{tpu_custom_call.1} parent=31 // pred_check_branch
          %188 = sbr.rel (%p186) target = $region36
        $region35: #{tpu_custom_call.1} parent=31 // pred_region
          %190 = dma.done %s182, 512
        $region36: #{tpu_custom_call.1} parent=31 // pred_fallthru
          _
        %s191 = sand.u32 %s28, 1
        %s192 = scalar_lea.sflag [#allocation3], %s191
        %s193 = sand.u32 %s28, 1
        %s194 = smul.addr %s193, 32
        %s195 = scalar_lea.vmem [#allocation2], %s194
        %p196 = pneg %p41
        %p197 = pneg %p38
        %p198 = scmp.lt.s32.totalorder %s20, 7
        %s199 = scalar_select %p198, %s20, 7
        %s200 = smul.addr %s199, 8
        %s201 = scalar_lea.vmem %s1, %s200
        %p202 = pneg %p67
        %p203 = pneg %p64
        %p204 = scmp.lt.s32.totalorder %s20, 7
        %s205 = scalar_select %p204, %s20, 7
        %s206 = smul.addr %s205, 8
        %s207 = scalar_lea.vmem %s2, %s206
        %p208 = pneg %p93
        %p209 = pneg %p90
        %p210 = pneg %p119
        %p211 = pneg %p116
        %s212 = sand.u32 %s106, 1
        %s213 = scalar_lea.sflag [#allocation4], %s212
        %s214 = sand.u32 %s106, 1
        %s215 = smul.addr %s214, 32
        %s216 = scalar_lea.vmem [#allocation5], %s215
        %p217 = scmp.lt.s32.totalorder %s20, 7
        %s218 = scalar_select %p217, %s20, 7
        %s219 = smul.addr %s218, 8
        %s220 = scalar_lea.vmem %s1, %s219
        %p221 = scmp.lt.s32.totalorder %s20, 7
        %s222 = scalar_select %p221, %s20, 7
        %s223 = smul.addr %s222, 8
        %s224 = scalar_lea.vmem %s2, %s223
        %v225 = vld [vmem:[%s185] sm:$0xff]
        %v226 = vld [vmem:[%s185 + $0x8] sm:$0xff]
        %v227 = vld [vmem:[%s185 + $0x10] sm:$0xff]
        %v228 = vld [vmem:[%s185 + $0x18] sm:$0xff]
        %v229 = vadd.f32 %v225, %v226
        %230 = vadd.xlane.f32.xlu0 %v229
        %v231 = vpop.xlane.xlu0 %230
        %v232 = vadd.f32 %v227, %v228
        %233 = vadd.xlane.f32.xlu0 %v232
        %v234 = vpop.xlane.xlu0 %233
        %v235 = vmul.f32 %v225, %v225
        %v236 = vmul.f32 %v226, %v226
        %v237 = vmul.f32 %v227, %v227
        %v238 = vmul.f32 %v228, %v228
        %v239 = vadd.f32 %v235, %v236
        %240 = vadd.xlane.f32.xlu0 %v239
        %v241 = vpop.xlane.xlu0 %240
        %v242 = vadd.f32 %v237, %v238
        %243 = vadd.xlane.f32.xlu0 %v242
        %v244 = vpop.xlane.xlu0 %243
        %v245 = vmul.f32 %v231, 0.00390625
        %v246 = vmul.f32 %v234, 0.00390625
        %v247 = vmul.f32 %v241, 0.00390625
        %v248 = vmul.f32 %v244, 0.00390625
        %v249 = vmul.f32 %v245, %v245
        %v250 = vmul.f32 %v246, %v246
        %v251 = vsub.f32 %v247, %v249
        %v252 = vsub.f32 %v248, %v250
        %v253 = vmax.f32 %v251, 0.0
        %v254 = vmax.f32 %v252, 0.0
        %v255 = vadd.f32 %v231, %v234
        %v256 = vadd.f32 %v241, %v244
        %v257 = vmul.f32 %v255, 0.001953125
        %v258 = vmul.f32 %v256, 0.001953125
        %v259 = vmul.f32 %v257, %v257
        %v260 = vsub.f32 %v258, %v259
        %v261 = vmax.f32 %v260, 0.0
        %v262 = vld [vmem:[%s220] sm:$0xff]
        %v263 = vld [vmem:[%s224] sm:$0xff]
        %v264 = vadd.f32 %v253, 1e-05
        %v265 = vadd.f32 %v254, 1e-05
        %v266 = vrsqrt.pop %v264
        %v267 = vmul.f32 %v266, %v264
        %v268 = vmul.f32 %v267, %v266
        %v269 = vmul.f32 0.5, %v268
        %v270 = vsub.f32 1.5, %v269
        %v271 = vmul.f32 %v266, %v270
        %vm272 = vweird.f32 %v264
        %vm273 = vweird.f32 %v266
        %vm274 = vmor %vm272, %vm273
        %v275 = vsel %vm274, %v266, %v271
        %v276 = vrsqrt.pop %v265
        %v277 = vmul.f32 %v276, %v265
        %v278 = vmul.f32 %v277, %v276
        %v279 = vmul.f32 0.5, %v278
        %v280 = vsub.f32 1.5, %v279
        %v281 = vmul.f32 %v276, %v280
        %vm282 = vweird.f32 %v265
        %vm283 = vweird.f32 %v276
        %vm284 = vmor %vm282, %vm283
        %v285 = vsel %vm284, %v276, %v281
        %v286 = vmul.f32 %v262, %v275
        %v287 = vmul.f32 %v262, %v285
        %v288 = vmul.f32 %v245, %v286
        %v289 = vmul.f32 %v246, %v287
        %v290 = vsub.f32 %v263, %v288
        %v291 = vsub.f32 %v263, %v289
        %v292 = vadd.f32 %v261, 1e-05
        %v293 = vrsqrt.pop %v292
        %v294 = vmul.f32 %v293, %v292
        %v295 = vmul.f32 %v294, %v293
        %v296 = vmul.f32 0.5, %v295
        %v297 = vsub.f32 1.5, %v296
        %v298 = vmul.f32 %v293, %v297
        %vm299 = vweird.f32 %v292
        %vm300 = vweird.f32 %v293
        %vm301 = vmor %vm299, %vm300
        %v302 = vsel %vm301, %v293, %v298
        %v303 = vmul.f32 %v262, %v302
        %v304 = vmul.f32 %v257, %v303
        %v305 = vsub.f32 %v263, %v304
        %s306 = smul.u32 %s20, 8
        %v307 = vlaneseq
        %v308 = vshrl.u32 %v307, 7
        %v309 = vstv %s306
        %v310 = vadd.s32 %v309, %v308
        %vm311 = vcmp.lt.s32.totalorder %v310, 32
        %v312 = vsel %vm311, 1, 0
        %vm313 = vcmp.eq.s32.totalorder %v312, 1
        %v314 = vsel %vm313, %v286, %v303
        %v315 = vsel %vm313, %v287, %v303
        %v316 = vsel %vm313, %v290, %v305
        %v317 = vsel %vm313, %v291, %v305
        %319 = vset.pattern.permute.xlu0 0
        %320 = vperm.xlu0 %319, %v314
        %v321 = vpop.permute.xlu0 %320
        %324 = vset.pattern.permute.xlu0 0
        %325 = vperm.xlu0 %324, %v315
        %v326 = vpop.permute.xlu0 %325
        %v328 = vmul.f32 %v225, %v321
        %v329 = vmul.f32 %v226, %v321
        %v330 = vmul.f32 %v227, %v326
        %v331 = vmul.f32 %v228, %v326
        %333 = vset.pattern.permute.xlu0 0
        %334 = vperm.xlu0 %333, %v316
        %v335 = vpop.permute.xlu0 %334
        %338 = vset.pattern.permute.xlu0 0
        %339 = vperm.xlu0 %338, %v317
        %v340 = vpop.permute.xlu0 %339
        %v342 = vadd.f32 %v328, %v335
        %v343 = vadd.f32 %v329, %v335
        %v344 = vadd.f32 %v330, %v340
        %v345 = vadd.f32 %v331, %v340
        %346 = vst [vmem:[%s216] sm:$0xff] %v342
        %347 = vst [vmem:[%s216 + $0x8] sm:$0xff] %v343
        %348 = vst [vmem:[%s216 + $0x10] sm:$0xff] %v344
        %349 = vst [vmem:[%s216 + $0x18] sm:$0xff] %v345
        %s350 = sand.u32 %s106, 1
        %s351 = scalar_lea.sflag [#allocation4], %s350
        %s352 = sand.u32 %s106, 1
        %s353 = smul.addr %s352, 32
        %s354 = scalar_lea.vmem [#allocation5], %s353
        // Predicated region
        $region37: #{tpu_custom_call.1} parent=31 // pred_check
          %p355 = pneg %p116
        $region38: #{tpu_custom_call.1} parent=31 // pred_check_branch
          %357 = sbr.rel (%p355) target = $region40
        $region39: #{tpu_custom_call.1} parent=31 // pred_region
          %359 = vsyncadd %s351, 0
          %s360 = smul.addr %s20, 2
          %s361 = smul.addr %s360, 8
          %s362 = scalar_lea.hbm %s3, %s361
          %s363 = sshll.u32 %s354, 4
          %s364 = int_to_ptr.vmem [resolvable:$true] %s363
          %s365 = sshll.u32 %s362, 4
          %s366 = int_to_ptr.hbm [resolvable:$true] %s365
          %371 = dma.vmem_to_hbm [thread:$0]  %s364, 512, %s366, %s351, 256, 2048, 16
        $region40: #{tpu_custom_call.1} parent=31 // pred_fallthru
          _
      $region32: #{tpu_custom_call.1} parent=5 // pred_fallthru
        _
      %p372 = scmp.le.s32.totalorder 2, %s15
      // Predicated region
      $region41: #{tpu_custom_call.1} parent=5 // pred_check
        %p373 = pneg %p372
      $region42: #{tpu_custom_call.1} parent=5 // pred_check_branch
        %375 = sbr.rel (%p373) target = $region44
      $region43: #{tpu_custom_call.1} parent=5 // pred_region
        %s376 = ssub.s32 %s15, 2
        // Predicated region
        $region45: #{tpu_custom_call.1} parent=43 // pred_check
          %p377 = pneg %p122
        $region46: #{tpu_custom_call.1} parent=43 // pred_check_branch
          %379 = sbr.rel (%p377) target = $region48
        $region47: #{tpu_custom_call.1} parent=43 // pred_region
          %s380 = sand.u32 %s107, 1
          %s381 = scalar_lea.sflag [#allocation4], %s380
          %s382 = sand.u32 %s107, 1
          %s383 = smul.addr %s382, 32
          %s384 = scalar_lea.vmem [#allocation5], %s383
          %386 = dma.done %s381, 512
        $region48: #{tpu_custom_call.1} parent=43 // pred_fallthru
          _
      $region44: #{tpu_custom_call.1} parent=5 // pred_fallthru
        _
    $region6: #{tpu_custom_call.1} parent=1 // loop_footer
      %s19 = sadd.s32 1, %s15
    $region7: #{tpu_custom_call.1} parent=1 // loop_footer_branch
      %14 = sbr.rel target = $region3
    $region8: #{tpu_custom_call.1} parent=1 // loop_exit
      _
    %387 = vsyncpa [#allocation3], 1
    %s388 = scalar_lea.sflag [#allocation3], 1
    %389 = vsyncpa %s388, 1
    %390 = vsyncpa [#allocation4], 1
    %s391 = scalar_lea.sflag [#allocation4], 1
    %392 = vsyncpa %s391, 1

</llo_original>
